<compile_context>
chip_gen: v5e
topology: v5e:2x2
jax: 0.10.0
libtpu: 0.0.40
codegen_flags: <defaults>
</compile_context>

<pallas_src>
import jax
import jax.numpy as jnp
from jax import lax
from jax.experimental import pallas as pl
from jax.experimental.pallas import tpu as pltpu


def lr_kernel(x_ref, w_ref, b_ref, o_ref):
    # x_ref: (TB, 24)  w_ref: (2, 24)  b_ref: (2, 1)  o_ref: (TB, 2)
    # Contract the feature axis of both operands directly -> (2, TB), so the
    # batch sits on lanes and the bias-add / sigmoid are lane-dense.
    z = lax.dot_general(
        w_ref[...], x_ref[...],
        dimension_numbers=(((1,), (1,)), ((), ())),
        preferred_element_type=jnp.float32,
    )                                      # (2, TB)
    y = jax.nn.sigmoid(z + b_ref[...])     # (2, 1) bias broadcasts over lanes
    # Epilogue transpose (XLU) so the kernel writes the (B, 2) output directly;
    # output traffic is only ~8% of total so the masked store is cheap.
    o_ref[...] = y.T.astype(o_ref.dtype)   # (TB, 2)


def _round_up(n, m):
    return ((n + m - 1) // m) * m


def lr_forward(x, weight, bias_col, *, tb=8192):
    """x: (B, 24) f32, weight: (2, 24) f32, bias_col: (2, 1) f32 -> (B, 2) f32."""
    B, in_f = x.shape
    out_f = weight.shape[0]

    # Keep any user-provided tile (8,128)-friendly.
    tb = max(128, _round_up(tb, 128))

    if B <= tb:
        if B > 4096:
            # Enough work to split: aim for >=2 blocks so both v7x TensorCores
            # (parallel batch axis) get a block.
            tile = _round_up(pl.cdiv(B, 2), 128)
        else:
            tile = B          # single full-array block (no divisibility needed)
    else:
        tile = tb

    n_blocks = pl.cdiv(B, tile)   # ragged last block is clipped by Pallas

    out = pl.pallas_call(
        lr_kernel,
        out_shape=jax.ShapeDtypeStruct((B, out_f), x.dtype),
        grid=(n_blocks,),
        in_specs=[
            pl.BlockSpec((tile, in_f), lambda i: (i, 0)),     # x: streamed tiles
            pl.BlockSpec((out_f, in_f), lambda i: (0, 0)),    # W: VMEM-resident
            pl.BlockSpec((out_f, 1), lambda i: (0, 0)),       # b: VMEM-resident
        ],
        out_specs=pl.BlockSpec((tile, out_f), lambda i: (i, 0)),  # direct (B, 2)
        compiler_params=pltpu.CompilerParams(
            dimension_semantics=("parallel",),
            # ~4 * tile * 512 B for the double-buffered x / out blocks at the
            # default tb=8192 -> 32 MiB is ample on v5e/v6e/v7x.
            vmem_limit_bytes=32 * 1024 * 1024,
        ),
    )(x, weight, bias_col)

    return out


if __name__ == "__main__":
    key = jax.random.PRNGKey(0)
    kx, kw, kb = jax.random.split(key, 3)

    # Ragged batch (250 % 128 != 0) exercises the no-pad edge-block path;
    # TB=128 keeps the demo on a multi-step grid (grid=(2,)).
    B, IN_F, OUT_F = 250, 24, 2
    TB = 128

    # nn.Linear default init: U(-1/sqrt(in_features), 1/sqrt(in_features))
    bound = 1.0 / jnp.sqrt(jnp.float32(IN_F))
    weight = jax.random.uniform(kw, (OUT_F, IN_F), jnp.float32, -bound, bound)
    bias = jax.random.uniform(kb, (OUT_F,), jnp.float32, -bound, bound)
    bias_col = bias.reshape(OUT_F, 1)   # hoisted once at parameter load

    x = jax.random.normal(kx, (B, IN_F), jnp.float32)

    fwd = jax.jit(lambda xx, ww, bb: lr_forward(xx, ww, bb, tb=TB))
    out = jax.block_until_ready(fwd(x, weight, bias_col))

    # Reference check in plain JAX
    ref = jax.nn.sigmoid(x @ weight.T + bias)
    assert out.shape == (B, OUT_F)
    assert jnp.allclose(out, ref, atol=1e-5, rtol=1e-5)

    print("KERNEL_OK")
</pallas_src>

<mosaic_0001>
module attributes {stable_mosaic.version = 11 : i64} {
  func.func @lr_kernel(%arg0: i32, %arg1: memref<128x24xf32, #tpu.memory_space<vmem>>, %arg2: memref<2x24xf32, #tpu.memory_space<vmem>>, %arg3: memref<2x1xf32, #tpu.memory_space<vmem>>, %arg4: memref<128x2xf32, #tpu.memory_space<vmem>>) attributes {dimension_semantics = [#tpu.dimension_semantics<parallel>], iteration_bounds = array<i64: 2>, scalar_prefetch = 0 : i64, scratch_operands = 0 : i64, tpu.core_type = #tpu.core_type<tc>, window_params = [{transform_indices = @transform_0, window_bounds = array<i64: 128, 24>}, {pipeline_mode = #tpu.pipeline_mode<synchronous>, transform_indices = @transform_1, window_bounds = array<i64: 2, 24>}, {pipeline_mode = #tpu.pipeline_mode<synchronous>, transform_indices = @transform_2, window_bounds = array<i64: 2, 1>}, {transform_indices = @transform_3, window_bounds = array<i64: 128, 2>}]} {
    %c0 = arith.constant 0 : index
    %c0_0 = arith.constant 0 : index
    %0 = vector.load %arg2[%c0, %c0_0] : memref<2x24xf32, #tpu.memory_space<vmem>>, vector<2x24xf32>
    %c0_1 = arith.constant 0 : index
    %c0_2 = arith.constant 0 : index
    %1 = vector.load %arg1[%c0_1, %c0_2] : memref<128x24xf32, #tpu.memory_space<vmem>>, vector<128x24xf32>
    %cst = arith.constant dense<0.000000e+00> : vector<2x128xf32>
    %2 = tpu.matmul %0, %1, %cst {dimension_numbers = #tpu.dot_dimension_numbers<[1], [1], [0], [0], [0, 0, 1, 0], [], []>} : vector<2x24xf32>, vector<128x24xf32>, vector<2x128xf32> -> vector<2x128xf32>
    %c0_3 = arith.constant 0 : index
    %c0_4 = arith.constant 0 : index
    %3 = vector.load %arg3[%c0_3, %c0_4] : memref<2x1xf32, #tpu.memory_space<vmem>>, vector<2x1xf32>
    %4 = vector.broadcast %3 : vector<2x1xf32> to vector<2x128xf32>
    %5 = arith.addf %2, %4 : vector<2x128xf32>
    %6 = arith.negf %5 : vector<2x128xf32>
    %7 = math.exp %6 : vector<2x128xf32>
    %cst_5 = arith.constant 1.000000e+00 : f32
    %8 = vector.broadcast %cst_5 : f32 to vector<2x128xf32>
    %9 = arith.addf %8, %7 : vector<2x128xf32>
    %10 = arith.divf %8, %9 : vector<2x128xf32>
    %11 = tpu.transpose %10, [1, 0] : vector<2x128xf32> -> vector<128x2xf32>
    %c0_6 = arith.constant 0 : index
    %c0_7 = arith.constant 0 : index
    %12 = vector.load %arg4[%c0_6, %c0_7] : memref<128x2xf32, #tpu.memory_space<vmem>>, vector<128x2xf32>
    tpu.vector_store %arg4[%c0_6, %c0_7], %11 {strides = array<i32>} : memref<128x2xf32, #tpu.memory_space<vmem>>, vector<128x2xf32>,
    return
  }
  func.func @transform_0(%arg0: i32) -> (i32, i32) {
    %c0_i32 = arith.constant 0 : i32
    %c0_i32_0 = arith.constant 0 : i32
    return %arg0, %c0_i32 : i32, i32
  }
  func.func @transform_1(%arg0: i32) -> (i32, i32) {
    %c0_i32 = arith.constant 0 : i32
    %c0_i32_0 = arith.constant 0 : i32
    %c0_i32_1 = arith.constant 0 : i32
    return %c0_i32, %c0_i32_0 : i32, i32
  }
  func.func @transform_2(%arg0: i32) -> (i32, i32) {
    %c0_i32 = arith.constant 0 : i32
    %c0_i32_0 = arith.constant 0 : i32
    %c0_i32_1 = arith.constant 0 : i32
    return %c0_i32, %c0_i32_0 : i32, i32
  }
  func.func @transform_3(%arg0: i32) -> (i32, i32) {
    %c0_i32 = arith.constant 0 : i32
    %c0_i32_0 = arith.constant 0 : i32
    return %arg0, %c0_i32 : i32, i32
  }
}

</mosaic_0001>

<llo_original>
// kernel: _lambda_.1
$region0: #{_lambda_.1}
  #allocation0 [shape = 'u32[]', space=smem, size = 0x4, offset = 0x4, fixed_abs, tag = 'smem constant byte address 0x4 - core index']
  #allocation1 [shape = 'u32[72,128]{1,0:T(1,128)}', space=vmem, size = 0x9000, scoped, tag = 'internal scratch']
  %s0 = inlined_call_operand.vmem [shape: f32[250,24], index: 0, kind: input, shape index: {}]
  %s1 = inlined_call_operand.vmem [shape: f32[2,24], index: 1, kind: input, shape index: {}]
  %s2 = inlined_call_operand.vmem [shape: f32[2,1], index: 2, kind: input, shape index: {}]
  %s3 = inlined_call_operand.vmem [shape: f32[250,2], index: 3, kind: output, shape index: {}]
  %s4 = sld [smem:[#allocation0]]
  $region45: #{_lambda_.1} parent=0
    _
  %s6 = ssub.s32 1, %s4
  %s7 = scalar_select 0, %s6, %s4
  loop: start=0, step=1, limit=4
  $region2: #{_lambda_.1} parent=0 // loop_pre_header
    _
  $region3: #{_lambda_.1} parent=0 // loop_header
    %s9 = sphi 0, %s13
    %p10 = scmp.ge.s32.totalorder %s9, 4
    %s19 = sphi 0, %s21
    %s22 = sphi 0, %s19
    %s23 = sphi 0, %s22
    %s39 = sphi 0, %s23
    %s43 = sphi 0, %s43
    %s45 = sphi 0, %s43
    %s46 = sphi 0, %s45
    %s60 = sphi 0, %s46
    %s64 = sphi 0, %s64
    %s66 = sphi 0, %s64
    %s67 = sphi 0, %s66
    %s81 = sphi 0, %s67
    %s87 = sphi 0, %s89
    %s90 = sphi 0, %s87
    %s91 = sphi 0, %s90
    %s107 = sphi 0, %s91
  $region4: #{_lambda_.1} parent=0 // loop_header_branch
    %12 = sbr.rel (%p10) target = $region8
  $region5: #{_lambda_.1} parent=0 // loop_body
    %s14 = ssub.s32 %s9, 1
    %s15 = ssub.s32 %s9, 2
    %s16 = sadd.s32 %s9, 1
    %s17 = ssub.s32 %s9, %s16
    %p18 = scmp.eq.s32.totalorder %s17, 0
    %s20 = sadd.s32 %s19, 1
    %s21 = scalar_select %p18, %s19, %s20
    %p24 = pneg %p18
    %p25 = scmp.eq.s32.totalorder %s9, 1
    %p26 = por %p24, %p25
    %p27 = scmp.ne.s32.totalorder %s19, %s22
    %p28 = scmp.eq.s32.totalorder %s9, 0
    %p29 = por %p27, %p28
    %p30 = scmp.ne.s32.totalorder %s19, %s22
    %p31 = scmp.eq.s32.totalorder %s14, 1
    %p32 = por %p30, %p31
    %p33 = scmp.ne.s32.totalorder %s22, %s23
    %p34 = scmp.eq.s32.totalorder %s14, 0
    %p35 = por %p33, %p34
    %p36 = scmp.ne.s32.totalorder %s22, %s23
    %p37 = scmp.eq.s32.totalorder %s15, 1
    %p38 = por %p36, %p37
    %p40 = scmp.ne.s32.totalorder %s23, %s39
    %p41 = scmp.eq.s32.totalorder %s15, 0
    %p42 = por %p40, %p41
    %s44 = sadd.s32 %s43, 1
    %p47 = scmp.eq.s32.totalorder %s9, 1
    %p48 = scmp.ne.s32.totalorder %s43, %s45
    %p49 = scmp.eq.s32.totalorder %s9, 0
    %p50 = por %p48, %p49
    %p51 = scmp.ne.s32.totalorder %s43, %s45
    %p52 = scmp.eq.s32.totalorder %s14, 1
    %p53 = por %p51, %p52
    %p54 = scmp.ne.s32.totalorder %s45, %s46
    %p55 = scmp.eq.s32.totalorder %s14, 0
    %p56 = por %p54, %p55
    %p57 = scmp.ne.s32.totalorder %s45, %s46
    %p58 = scmp.eq.s32.totalorder %s15, 1
    %p59 = por %p57, %p58
    %p61 = scmp.ne.s32.totalorder %s46, %s60
    %p62 = scmp.eq.s32.totalorder %s15, 0
    %p63 = por %p61, %p62
    %s65 = sadd.s32 %s64, 1
    %p68 = scmp.eq.s32.totalorder %s9, 1
    %p69 = scmp.ne.s32.totalorder %s64, %s66
    %p70 = scmp.eq.s32.totalorder %s9, 0
    %p71 = por %p69, %p70
    %p72 = scmp.ne.s32.totalorder %s64, %s66
    %p73 = scmp.eq.s32.totalorder %s14, 1
    %p74 = por %p72, %p73
    %p75 = scmp.ne.s32.totalorder %s66, %s67
    %p76 = scmp.eq.s32.totalorder %s14, 0
    %p77 = por %p75, %p76
    %p78 = scmp.ne.s32.totalorder %s66, %s67
    %p79 = scmp.eq.s32.totalorder %s15, 1
    %p80 = por %p78, %p79
    %p82 = scmp.ne.s32.totalorder %s67, %s81
    %p83 = scmp.eq.s32.totalorder %s15, 0
    %p84 = por %p82, %p83
    %s85 = ssub.s32 %s9, %s16
    %p86 = scmp.eq.s32.totalorder %s85, 0
    %s88 = sadd.s32 %s87, 1
    %s89 = scalar_select %p86, %s87, %s88
    %p92 = pneg %p86
    %p93 = scmp.eq.s32.totalorder %s9, 1
    %p94 = por %p92, %p93
    %p95 = scmp.ne.s32.totalorder %s87, %s90
    %p96 = scmp.eq.s32.totalorder %s9, 0
    %p97 = por %p95, %p96
    %p98 = scmp.ne.s32.totalorder %s87, %s90
    %p99 = scmp.eq.s32.totalorder %s14, 1
    %p100 = por %p98, %p99
    %p101 = scmp.ne.s32.totalorder %s90, %s91
    %p102 = scmp.eq.s32.totalorder %s14, 0
    %p103 = por %p101, %p102
    %p104 = scmp.ne.s32.totalorder %s90, %s91
    %p105 = scmp.eq.s32.totalorder %s15, 1
    %p106 = por %p104, %p105
    %p108 = scmp.ne.s32.totalorder %s91, %s107
    %p109 = scmp.eq.s32.totalorder %s15, 0
    %p110 = por %p108, %p109
    %p111 = scmp.le.s32.totalorder 1, %s9
    %p112 = scmp.lt.s32.totalorder %s9, 3
    %p113 = pnand %p111, %p112
    %p114 = pneg %p113
    // Predicated region
    $region9: #{_lambda_.1} parent=5 // pred_check
      _
    $region10: #{_lambda_.1} parent=5 // pred_check_branch
      %116 = sbr.rel (%p113) target = $region12
    $region11: #{_lambda_.1} parent=5 // pred_region
      %s117 = ssub.s32 %s9, 1
      // Predicated region
      $region13: #{_lambda_.1} parent=11 // pred_check
        %p118 = pneg %p56
      $region14: #{_lambda_.1} parent=11 // pred_check_branch
        %120 = sbr.rel (%p118) target = $region16
      $region15: #{_lambda_.1} parent=11 // pred_region
        _
      $region16: #{_lambda_.1} parent=11 // pred_fallthru
        _
      // Predicated region
      $region17: #{_lambda_.1} parent=11 // pred_check
        %p121 = pneg %p77
      $region18: #{_lambda_.1} parent=11 // pred_check_branch
        %123 = sbr.rel (%p121) target = $region20
      $region19: #{_lambda_.1} parent=11 // pred_region
        _
      $region20: #{_lambda_.1} parent=11 // pred_fallthru
        _
    $region12: #{_lambda_.1} parent=5 // pred_fallthru
      _
    %p124 = scmp.lt.s32.totalorder %s9, 2
    // Predicated region
    $region21: #{_lambda_.1} parent=5 // pred_check
      %p125 = pneg %p124
    $region22: #{_lambda_.1} parent=5 // pred_check_branch
      %127 = sbr.rel (%p125) target = $region24
    $region23: #{_lambda_.1} parent=5 // pred_region
      // Predicated region
      $region25: #{_lambda_.1} parent=23 // pred_check
        %p128 = pneg %p29
      $region26: #{_lambda_.1} parent=23 // pred_check_branch
        %130 = sbr.rel (%p128) target = $region28
      $region27: #{_lambda_.1} parent=23 // pred_region
        %s131 = smul.u32 16, %s9
        %p132 = scmp.lt.s32.totalorder %s131, 31
        %s133 = scalar_select %p132, %s131, 31
        %s134 = smul.addr %s133, 8
        %s135 = scalar_lea.vmem %s0, %s134
        %s136 = smul.u32 16, %s9
      $region28: #{_lambda_.1} parent=23 // pred_fallthru
        _
    $region24: #{_lambda_.1} parent=5 // pred_fallthru
      _
    %p137 = scmp.le.s32.totalorder 1, %s9
    %p138 = scmp.lt.s32.totalorder %s9, 3
    %p139 = pnand %p137, %p138
    %p140 = pneg %p139
    // Predicated region
    $region29: #{_lambda_.1} parent=5 // pred_check
      _
    $region30: #{_lambda_.1} parent=5 // pred_check_branch
      %142 = sbr.rel (%p139) target = $region32
    $region31: #{_lambda_.1} parent=5 // pred_region
      %s143 = ssub.s32 %s9, 1
      %s144 = smul.u32 16, %s14
      %p145 = scmp.lt.s32.totalorder %s144, 31
      %s146 = scalar_select %p145, %s144, 31
      %s147 = smul.addr %s146, 8
      %s148 = scalar_lea.vmem %s0, %s147
      %p149 = pneg %p35
      %p150 = pneg %p32
      %p151 = pneg %p56
      %p152 = pneg %p53
      %p153 = pneg %p77
      %p154 = pneg %p74
      %p155 = pneg %p103
      %p156 = pneg %p100
      %s157 = smul.u32 16, %s14
      %p158 = scmp.lt.s32.totalorder %s157, 31
      %s159 = scalar_select %p158, %s157, 31
      %s160 = smul.addr %s159, 8
      %s161 = scalar_lea.vmem %s3, %s160
      %s162 = smul.u32 16, %s14
      %p163 = scmp.lt.s32.totalorder %s162, 31
      %s164 = scalar_select %p163, %s162, 31
      %s165 = smul.addr %s164, 8
      %s166 = scalar_lea.vmem %s0, %s165
      %s167 = smul.u32 16, %s14
      %s168 = smul.u32 16, %s14
      %p169 = scmp.lt.s32.totalorder %s168, 31
      %s170 = scalar_select %p169, %s168, 31
      %s171 = smul.addr %s170, 8
      %s172 = scalar_lea.vmem %s3, %s171
      %s173 = smul.u32 16, %s14
      %v174 = vld [vmem:[%s1] sm:$0x3]
      %v175 = vld [vmem:[%s166] sm:$0xff]
      %v176 = vld [vmem:[%s166 + $0x8] sm:$0xff]
      %v177 = vld [vmem:[%s166 + $0x10] sm:$0xff]
      %v178 = vld [vmem:[%s166 + $0x18] sm:$0xff]
      %v179 = vld [vmem:[%s166 + $0x20] sm:$0xff]
      %v180 = vld [vmem:[%s166 + $0x28] sm:$0xff]
      %v181 = vld [vmem:[%s166 + $0x30] sm:$0xff]
      %v182 = vld [vmem:[%s166 + $0x38] sm:$0xff]
      %v183 = vld [vmem:[%s166 + $0x40] sm:$0xff]
      %v184 = vld [vmem:[%s166 + $0x48] sm:$0xff]
      %v185 = vld [vmem:[%s166 + $0x50] sm:$0xff]
      %v186 = vld [vmem:[%s166 + $0x58] sm:$0xff]
      %v187 = vld [vmem:[%s166 + $0x60] sm:$0xff]
      %v188 = vld [vmem:[%s166 + $0x68] sm:$0xff]
      %v189 = vld [vmem:[%s166 + $0x70] sm:$0xff]
      %v190 = vld [vmem:[%s166 + $0x78] sm:$0xff]
      %v191 = vld [vmem:[%s2] sm:$0x3]
      %193 = vset.pattern.permute.xlu0 0
      %194 = vperm.xlu0 %193, %v191
      %v195 = vpop.permute.xlu0 %194
      %vm197 = vcmask 195584
      %v199 = vsel %vm197, %v174, 0
      %v202 = vsel %vm197, %v175, 0
      %v205 = vsel %vm197, %v176, 0
      %v208 = vsel %vm197, %v177, 0
      %v211 = vsel %vm197, %v178, 0
      %v214 = vsel %vm197, %v179, 0
      %v217 = vsel %vm197, %v180, 0
      %v220 = vsel %vm197, %v181, 0
      %v223 = vsel %vm197, %v182, 0
      %v226 = vsel %vm197, %v183, 0
      %v229 = vsel %vm197, %v184, 0
      %v232 = vsel %vm197, %v185, 0
      %v235 = vsel %vm197, %v186, 0
      %v238 = vsel %vm197, %v187, 0
      %v241 = vsel %vm197, %v188, 0
      %v244 = vsel %vm197, %v189, 0
      %v247 = vsel %vm197, %v190, 0
      %249 = vmatpush.xpose.msra.mxu0 %v247
      %250 = vmatpush.xpose.msra.mxu0 %v244
      %251 = vmatpush.xpose.msra.mxu0 %v241
      %252 = vmatpush.xpose.msra.mxu0 %v238
      %253 = vmatpush.xpose.msra.mxu0 %v235
      %254 = vmatpush.xpose.msra.mxu0 %v232
      %255 = vmatpush.xpose.msra.mxu0 %v229
      %256 = vmatpush.xpose.msra.mxu0 %v226
      %257 = vmatpush.xpose.msra.mxu0 %v223
      %258 = vmatpush.xpose.msra.mxu0 %v220
      %259 = vmatpush.xpose.msra.mxu0 %v217
      %260 = vmatpush.xpose.msra.mxu0 %v214
      %261 = vmatpush.xpose.msra.mxu0 %v211
      %262 = vmatpush.xpose.msra.mxu0 %v208
      %263 = vmatpush.xpose.msra.mxu0 %v205
      %264 = vmatpush.xpose.msra.mxu0 %v202
      %265 = vmatmul.f32.gmra.mxu0 %v199
      %v266 = vpop.f32.mrf.mxu0
      %v267 = vadd.f32 %v195, %v266
      %268 = vdwg.mxu0
      %v269 = vxor.u32 %v267, 2147483648
      %v270 = vmul.f32 %v269, 1.442695
      %v271 = vpow.pop %v270
      %v272 = vadd.f32 %v271, 1.0
      %v273 = vrcp.pop %v272
      %v274 = vmul.f32 %v272, %v273
      %v275 = vsub.f32 1.0, %v274
      %v276 = vmul.f32 %v273, %v275
      %v277 = vadd.f32 %v273, %v276
      %vm278 = vweird.f32 %v272
      %vm279 = vweird.f32 %v273
      %vm280 = vmor %vm278, %vm279
      %v281 = vsel %vm280, %v273, %v277
      %v282 = vand.u32 2147483647, %v272
      %vm283 = vcmp.eq.f32.partialorder %v282, 8.507059e+37
      %v284 = vand.u32 %v272, 2147483648
      %v285 = vor.u32 1.1754944e-38, %v284
      %v286 = vsel %vm283, %v285, %v281
      %v287 = vmul.f32 1.0, %v286
      %288 = vxpose.xlu0.b32.start [1/16] %v287, 128
      %289 = vxpose.xlu0.b32.cont [2/16] 0.0, 128
      %290 = vxpose.xlu0.b32.cont [3/16] 0.0, 128
      %291 = vxpose.xlu0.b32.cont [4/16] 0.0, 128
      %292 = vxpose.xlu0.b32.cont [5/16] 0.0, 128
      %293 = vxpose.xlu0.b32.cont [6/16] 0.0, 128
      %294 = vxpose.xlu0.b32.cont [7/16] 0.0, 128
      %295 = vxpose.xlu0.b32.cont [8/16] 0.0, 128
      %296 = vxpose.xlu0.b32.cont [9/16] 0.0, 128
      %297 = vxpose.xlu0.b32.cont [10/16] 0.0, 128
      %298 = vxpose.xlu0.b32.cont [11/16] 0.0, 128
      %299 = vxpose.xlu0.b32.cont [12/16] 0.0, 128
      %300 = vxpose.xlu0.b32.cont [13/16] 0.0, 128
      %301 = vxpose.xlu0.b32.cont [14/16] 0.0, 128
      %302 = vxpose.xlu0.b32.cont [15/16] 0.0, 128
      %303 = vxpose.xlu0.b32.end [16/16] 0.0, 128
      %v304 = vpop.trf.xlu0
      %v305 = vpop.trf.xlu0
      %v306 = vpop.trf.xlu0
      %v307 = vpop.trf.xlu0
      %v308 = vpop.trf.xlu0
      %v309 = vpop.trf.xlu0
      %v310 = vpop.trf.xlu0
      %v311 = vpop.trf.xlu0
      %v312 = vpop.trf.xlu0
      %v313 = vpop.trf.xlu0
      %v314 = vpop.trf.xlu0
      %v315 = vpop.trf.xlu0
      %v316 = vpop.trf.xlu0
      %v317 = vpop.trf.xlu0
      %v318 = vpop.trf.xlu0
      %v319 = vpop.trf.xlu0
      %vm320 = vcmask 15360
      %321 = vst.msk [vmem:[%s172] sm:$0xff] %vm320, %v304
      %322 = vst.msk [vmem:[%s172 + $0x8] sm:$0xff] %vm320, %v305
      %323 = vst.msk [vmem:[%s172 + $0x10] sm:$0xff] %vm320, %v306
      %324 = vst.msk [vmem:[%s172 + $0x18] sm:$0xff] %vm320, %v307
      %325 = vst.msk [vmem:[%s172 + $0x20] sm:$0xff] %vm320, %v308
      %326 = vst.msk [vmem:[%s172 + $0x28] sm:$0xff] %vm320, %v309
      %327 = vst.msk [vmem:[%s172 + $0x30] sm:$0xff] %vm320, %v310
      %328 = vst.msk [vmem:[%s172 + $0x38] sm:$0xff] %vm320, %v311
      %329 = vst.msk [vmem:[%s172 + $0x40] sm:$0xff] %vm320, %v312
      %330 = vst.msk [vmem:[%s172 + $0x48] sm:$0xff] %vm320, %v313
      %331 = vst.msk [vmem:[%s172 + $0x50] sm:$0xff] %vm320, %v314
      %332 = vst.msk [vmem:[%s172 + $0x58] sm:$0xff] %vm320, %v315
      %333 = vst.msk [vmem:[%s172 + $0x60] sm:$0xff] %vm320, %v316
      %334 = vst.msk [vmem:[%s172 + $0x68] sm:$0xff] %vm320, %v317
      %335 = vst.msk [vmem:[%s172 + $0x70] sm:$0xff] %vm320, %v318
      %336 = vst.msk [vmem:[%s172 + $0x78] sm:$0xff] %vm320, %v319
      %s337 = smul.u32 16, %s14
      %p338 = scmp.lt.s32.totalorder %s337, 31
      %s339 = scalar_select %p338, %s337, 31
      %s340 = smul.addr %s339, 8
      %s341 = scalar_lea.vmem %s3, %s340
      // Predicated region
      $region33: #{_lambda_.1} parent=31 // pred_check
        %p342 = pneg %p100
      $region34: #{_lambda_.1} parent=31 // pred_check_branch
        %344 = sbr.rel (%p342) target = $region36
      $region35: #{_lambda_.1} parent=31 // pred_region
        %s345 = smul.u32 16, %s14
      $region36: #{_lambda_.1} parent=31 // pred_fallthru
        _
    $region32: #{_lambda_.1} parent=5 // pred_fallthru
      _
    %p346 = scmp.le.s32.totalorder 2, %s9
    // Predicated region
    $region37: #{_lambda_.1} parent=5 // pred_check
      %p347 = pneg %p346
    $region38: #{_lambda_.1} parent=5 // pred_check_branch
      %349 = sbr.rel (%p347) target = $region40
    $region39: #{_lambda_.1} parent=5 // pred_region
      %s350 = ssub.s32 %s9, 2
      // Predicated region
      $region41: #{_lambda_.1} parent=39 // pred_check
        %p351 = pneg %p106
      $region42: #{_lambda_.1} parent=39 // pred_check_branch
        %353 = sbr.rel (%p351) target = $region44
      $region43: #{_lambda_.1} parent=39 // pred_region
        %s354 = smul.u32 16, %s15
        %p355 = scmp.lt.s32.totalorder %s354, 31
        %s356 = scalar_select %p355, %s354, 31
        %s357 = smul.addr %s356, 8
        %s358 = scalar_lea.vmem %s3, %s357
      $region44: #{_lambda_.1} parent=39 // pred_fallthru
        _
    $region40: #{_lambda_.1} parent=5 // pred_fallthru
      _
  $region6: #{_lambda_.1} parent=0 // loop_footer
    %s13 = sadd.s32 1, %s9
  $region7: #{_lambda_.1} parent=0 // loop_footer_branch
    %8 = sbr.rel target = $region3
  $region8: #{_lambda_.1} parent=0 // loop_exit
    _

</llo_original>
